<compile_context>
chip_gen: v6e
topology: v6e:2x2x1
jax: 0.10.0
libtpu: 0.0.40
codegen_flags: <defaults>
</compile_context>

<pallas_src>
import functools
import math

import jax
import jax.numpy as jnp
from jax.experimental import pallas as pl
from jax.experimental.pallas import tpu as pltpu

LANE = 128      # vreg lane width  -> last-dim padding target
SUBLANE = 8     # vreg sublane count -> batch-tile granularity


def _round_up(n, m):
    return ((n + m - 1) // m) * m


# -----------------------------------------------------------------------------
# Fused Pallas kernel: the whole MLP in one invocation
# -----------------------------------------------------------------------------
def _mlp_kernel(*refs, n_layers, hidden_act, matmul_dtype):
    """refs = (x_ref, w0_ref, b0_ref, ..., w_{L-1}_ref, b_{L-1}_ref, o_ref).

    x_ref:  (TB, Din_p)      f32
    w_i:    (Dprev_p, Dcur_p) matmul_dtype (bf16 by default)
    b_i:    (1, Dcur_p)       f32
    o_ref:  (TB, Dout_p)      f32
    """
    x_ref = refs[0]
    o_ref = refs[-1]
    wb_refs = refs[1:-1]

    h = x_ref[...]  # f32 activation tile, stays VMEM/vreg resident throughout
    for i in range(n_layers):
        w_ref = wb_refs[2 * i]
        b_ref = wb_refs[2 * i + 1]
        # MXU matmul: bf16 operands, f32 accumulate.
        y = jnp.dot(h.astype(matmul_dtype), w_ref[...],
                    preferred_element_type=jnp.float32)
        # Bias is already (1, Dout_p): one sublane-broadcast add per layer.
        y = y + b_ref[...]
        act = "sigmoid" if i == n_layers - 1 else hidden_act
        if act == "relu":
            h = jnp.maximum(y, 0.0)
        elif act == "leaky_relu":
            # negative_slope=0.1, matching the PyTorch module (explicitly set).
            h = jnp.where(y >= 0.0, y, 0.1 * y)
        elif act == "sigmoid":
            # exp on EUP; divide replaced by EUP vrcp (approx) -> VALU stays free.
            h = pl.reciprocal(1.0 + jnp.exp(-y), approx=True)
        else:
            h = y
        # TODO(synk): training-mode dropout (p>0) not implemented; eval-mode
        # (identity) semantics are assumed, matching the p=0.0 default.
    o_ref[...] = h.astype(o_ref.dtype)


# -----------------------------------------------------------------------------
# FeedForward module (parameters built deterministically in-script)
# -----------------------------------------------------------------------------
class FeedForwardPallas:
    def __init__(self, hidden_size=2, n_layers=1, input_size=1, output_size=1,
                 p=0.0, activation="ReLU", bias=True, key=None,
                 matmul_dtype=jnp.bfloat16):
        self.n_layers = n_layers
        self.input_size = input_size
        self.output_size = output_size
        self.p = p  # dropout prob; identity at p=0.0 / eval mode
        self.matmul_dtype = matmul_dtype

        if activation == "sigmoid":
            self.act = "sigmoid"
        elif activation == "ReLU":
            self.act = "relu"
        elif activation == "LeakyReLU":
            self.act = "leaky_relu"
        else:
            raise Exception("{} not an available activation".format(activation))

        size = [input_size] + [hidden_size] * (n_layers - 1) + [output_size]
        self.sizes = size
        self.sizes_p = [_round_up(s, LANE) for s in size]  # lane-dense padding

        if key is None:
            key = jax.random.PRNGKey(0)

        # Keep exact f32 params for the pure-JAX reference, plus padded
        # (lane-dense, bf16) copies for the kernel.
        self.weights_f32, self.biases_f32 = [], []
        self.weights_p, self.biases_p = [], []
        for i in range(n_layers):
            fan_in, fan_out = size[i], size[i + 1]
            fan_in_p, fan_out_p = self.sizes_p[i], self.sizes_p[i + 1]
            key, kw, kb = jax.random.split(key, 3)
            bound = 1.0 / math.sqrt(fan_in)  # PyTorch nn.Linear default init
            w = jax.random.uniform(kw, (fan_in, fan_out), jnp.float32, -bound, bound)
            bvec = (jax.random.uniform(kb, (fan_out,), jnp.float32, -bound, bound)
                    if bias else jnp.zeros((fan_out,), jnp.float32))
            self.weights_f32.append(w)
            self.biases_f32.append(bvec)

            # Zero-pad: padded rows/cols contribute nothing, so padding is inert.
            wp = jnp.zeros((fan_in_p, fan_out_p), jnp.float32)
            wp = wp.at[:fan_in, :fan_out].set(w)
            bp = jnp.zeros((1, fan_out_p), jnp.float32)
            bp = bp.at[0, :fan_out].set(bvec)
            self.weights_p.append(wp.astype(matmul_dtype))
            self.biases_p.append(bp)  # bias stays f32 (added to f32 accumulator)

        self._jit_forward = jax.jit(self._forward)

    # --- forward (traced under jit; shapes are static at trace time) ---------
    def _forward(self, x):
        batch = x.shape[0]
        x = x.reshape(batch, -1).astype(jnp.float32)  # flatten non-batch dims
        din = x.shape[1]
        assert din == self.input_size, (din, self.input_size)

        din_p = self.sizes_p[0]
        out_p = self.sizes_p[-1]

        # Batch tile: multiple of 8 sublanes, up to 512 rows per block.
        tb = min(512, _round_up(batch, SUBLANE))
        batch_p = _round_up(batch, tb)
        x_p = jnp.zeros((batch_p, din_p), jnp.float32).at[:batch, :din].set(x)

        grid = (batch_p // tb,)
        in_specs = [pl.BlockSpec((tb, din_p), lambda i: (i, 0))]
        operands = [x_p]
        for wp, bp in zip(self.weights_p, self.biases_p):
            # Constant index maps -> weights/biases stay VMEM-resident across
            # grid steps (no re-DMA per batch tile).
            in_specs.append(pl.BlockSpec(wp.shape, lambda i: (0, 0)))
            in_specs.append(pl.BlockSpec(bp.shape, lambda i: (0, 0)))
            operands.append(wp)
            operands.append(bp)
        out_spec = pl.BlockSpec((tb, out_p), lambda i: (i, 0))

        # VMEM budget estimate (double-buffered activation tiles + resident
        # params), with generous headroom; tiny vs. every generation's VMEM
        # (v5e/v6e 128 MiB, v7x 64 MiB).
        est = 2 * tb * (din_p + out_p) * 4
        est += 2 * sum(int(w.size) * w.dtype.itemsize for w in self.weights_p)
        est += 2 * sum(int(b.size) * 4 for b in self.biases_p)
        vmem_limit = int(max(16 * 1024 * 1024, 4 * est))

        kernel = functools.partial(
            _mlp_kernel,
            n_layers=self.n_layers,
            hidden_act=self.act,
            matmul_dtype=self.matmul_dtype,
        )

        out_padded = pl.pallas_call(
            kernel,
            out_shape=jax.ShapeDtypeStruct((batch_p, out_p), jnp.float32),
            grid=grid,
            in_specs=in_specs,
            out_specs=out_spec,
            compiler_params=pltpu.CompilerParams(
                dimension_semantics=("parallel",),   # batch tiles -> megacore/2nd TC
                vmem_limit_bytes=vmem_limit,
            ),
        )(*operands)

        return out_padded[:batch, :self.output_size]

    def __call__(self, x):
        return self._jit_forward(x)


# -----------------------------------------------------------------------------
# Reference (pure JAX, exact f32 math) for a sanity check
# -----------------------------------------------------------------------------
def reference_forward(model, x):
    h = x.reshape(x.shape[0], -1).astype(jnp.float32)
    for i in range(model.n_layers - 1):
        h = h @ model.weights_f32[i] + model.biases_f32[i]
        if model.act == "relu":
            h = jnp.maximum(h, 0.0)
        elif model.act == "leaky_relu":
            h = jnp.where(h >= 0.0, h, 0.1 * h)
        else:
            h = jax.nn.sigmoid(h)
    h = h @ model.weights_f32[-1] + model.biases_f32[-1]
    return jax.nn.sigmoid(h)


if __name__ == "__main__":
    key = jax.random.PRNGKey(0)
    k_param, k_x = jax.random.split(key)

    # Small config consistent with the module: (batch, 4, 8) flattens to 32 features.
    batch, c, t = 8, 4, 8
    input_size = c * t
    model = FeedForwardPallas(hidden_size=32, n_layers=3, input_size=input_size,
                              output_size=16, p=0.0, activation="ReLU",
                              bias=True, key=k_param)

    x = jax.random.normal(k_x, (batch, c, t), jnp.float32)

    out = model(x)
    out = jax.block_until_ready(out)

    ref = reference_forward(model, x)
    assert out.shape == (batch, 16), out.shape
    # Tolerance accounts for bf16 matmul operands + approx (EUP) reciprocal in
    # the sigmoid; sigmoid output lies in [0, 1], so 3e-2 abs still catches bugs.
    assert jnp.allclose(out, ref, atol=3e-2, rtol=3e-2), "mismatch vs reference"

    print("KERNEL_OK")
</pallas_src>

<mosaic_0001>
module attributes {stable_mosaic.version = 11 : i64} {
  func.func @_mlp_kernel(%arg0: i32, %arg1: memref<8x128xf32, #tpu.memory_space<vmem>>, %arg2: memref<128x128xbf16, #tpu.memory_space<vmem>>, %arg3: memref<1x128xf32, #tpu.memory_space<vmem>>, %arg4: memref<128x128xbf16, #tpu.memory_space<vmem>>, %arg5: memref<1x128xf32, #tpu.memory_space<vmem>>, %arg6: memref<128x128xbf16, #tpu.memory_space<vmem>>, %arg7: memref<1x128xf32, #tpu.memory_space<vmem>>, %arg8: memref<8x128xf32, #tpu.memory_space<vmem>>) attributes {dimension_semantics = [#tpu.dimension_semantics<parallel>], iteration_bounds = array<i64: 1>, scalar_prefetch = 0 : i64, scratch_operands = 0 : i64, tpu.core_type = #tpu.core_type<tc>, window_params = [{transform_indices = @transform_0, window_bounds = array<i64: 8, 128>}, {pipeline_mode = #tpu.pipeline_mode<synchronous>, transform_indices = @transform_1, window_bounds = array<i64: 128, 128>}, {pipeline_mode = #tpu.pipeline_mode<synchronous>, transform_indices = @transform_2, window_bounds = array<i64: 1, 128>}, {pipeline_mode = #tpu.pipeline_mode<synchronous>, transform_indices = @transform_3, window_bounds = array<i64: 128, 128>}, {pipeline_mode = #tpu.pipeline_mode<synchronous>, transform_indices = @transform_4, window_bounds = array<i64: 1, 128>}, {pipeline_mode = #tpu.pipeline_mode<synchronous>, transform_indices = @transform_5, window_bounds = array<i64: 128, 128>}, {pipeline_mode = #tpu.pipeline_mode<synchronous>, transform_indices = @transform_6, window_bounds = array<i64: 1, 128>}, {transform_indices = @transform_7, window_bounds = array<i64: 8, 128>}]} {
    %c0 = arith.constant 0 : index
    %c0_0 = arith.constant 0 : index
    %0 = vector.load %arg1[%c0, %c0_0] : memref<8x128xf32, #tpu.memory_space<vmem>>, vector<8x128xf32>
    %1 = arith.truncf %0 : vector<8x128xf32> to vector<8x128xbf16>
    %c0_1 = arith.constant 0 : index
    %c0_2 = arith.constant 0 : index
    %2 = vector.load %arg2[%c0_1, %c0_2] : memref<128x128xbf16, #tpu.memory_space<vmem>>, vector<128x128xbf16>
    %cst = arith.constant dense<0.000000e+00> : vector<8x128xf32>
    %3 = tpu.matmul %1, %2, %cst {dimension_numbers = #tpu.dot_dimension_numbers<[1], [0], [0], [1], [0, 0, 1, 1], [], []>} : vector<8x128xbf16>, vector<128x128xbf16>, vector<8x128xf32> -> vector<8x128xf32>
    %c0_3 = arith.constant 0 : index
    %c0_4 = arith.constant 0 : index
    %4 = vector.load %arg3[%c0_3, %c0_4] : memref<1x128xf32, #tpu.memory_space<vmem>>, vector<1x128xf32>
    %5 = vector.broadcast %4 : vector<1x128xf32> to vector<8x128xf32>
    %6 = arith.addf %3, %5 : vector<8x128xf32>
    %cst_5 = arith.constant 0.000000e+00 : f32
    %7 = vector.broadcast %cst_5 : f32 to vector<8x128xf32>
    %8 = arith.maximumf %6, %7 : vector<8x128xf32>
    %9 = arith.truncf %8 : vector<8x128xf32> to vector<8x128xbf16>
    %c0_6 = arith.constant 0 : index
    %c0_7 = arith.constant 0 : index
    %10 = vector.load %arg4[%c0_6, %c0_7] : memref<128x128xbf16, #tpu.memory_space<vmem>>, vector<128x128xbf16>
    %cst_8 = arith.constant dense<0.000000e+00> : vector<8x128xf32>
    %11 = tpu.matmul %9, %10, %cst_8 {dimension_numbers = #tpu.dot_dimension_numbers<[1], [0], [0], [1], [0, 0, 1, 1], [], []>} : vector<8x128xbf16>, vector<128x128xbf16>, vector<8x128xf32> -> vector<8x128xf32>
    %c0_9 = arith.constant 0 : index
    %c0_10 = arith.constant 0 : index
    %12 = vector.load %arg5[%c0_9, %c0_10] : memref<1x128xf32, #tpu.memory_space<vmem>>, vector<1x128xf32>
    %13 = vector.broadcast %12 : vector<1x128xf32> to vector<8x128xf32>
    %14 = arith.addf %11, %13 : vector<8x128xf32>
    %cst_11 = arith.constant 0.000000e+00 : f32
    %15 = vector.broadcast %cst_11 : f32 to vector<8x128xf32>
    %16 = arith.maximumf %14, %15 : vector<8x128xf32>
    %17 = arith.truncf %16 : vector<8x128xf32> to vector<8x128xbf16>
    %c0_12 = arith.constant 0 : index
    %c0_13 = arith.constant 0 : index
    %18 = vector.load %arg6[%c0_12, %c0_13] : memref<128x128xbf16, #tpu.memory_space<vmem>>, vector<128x128xbf16>
    %cst_14 = arith.constant dense<0.000000e+00> : vector<8x128xf32>
    %19 = tpu.matmul %17, %18, %cst_14 {dimension_numbers = #tpu.dot_dimension_numbers<[1], [0], [0], [1], [0, 0, 1, 1], [], []>} : vector<8x128xbf16>, vector<128x128xbf16>, vector<8x128xf32> -> vector<8x128xf32>
    %c0_15 = arith.constant 0 : index
    %c0_16 = arith.constant 0 : index
    %20 = vector.load %arg7[%c0_15, %c0_16] : memref<1x128xf32, #tpu.memory_space<vmem>>, vector<1x128xf32>
    %21 = vector.broadcast %20 : vector<1x128xf32> to vector<8x128xf32>
    %22 = arith.addf %19, %21 : vector<8x128xf32>
    %cst_17 = arith.constant 0.000000e+00 : f32
    %23 = vector.broadcast %cst_17 : f32 to vector<8x128xf32>
    %24 = arith.subf %23, %22 : vector<8x128xf32>
    %25 = math.exp %24 : vector<8x128xf32>
    %cst_18 = arith.constant 1.000000e+00 : f32
    %26 = vector.broadcast %cst_18 : f32 to vector<8x128xf32>
    %27 = arith.addf %26, %25 : vector<8x128xf32>
    %28 = tpu.reciprocal %27 {approx = true} : vector<8x128xf32> -> vector<8x128xf32>
    %c0_19 = arith.constant 0 : index
    %c0_20 = arith.constant 0 : index
    %29 = vector.load %arg8[%c0_19, %c0_20] : memref<8x128xf32, #tpu.memory_space<vmem>>, vector<8x128xf32>
    tpu.vector_store %arg8[%c0_19, %c0_20], %28 {strides = array<i32>} : memref<8x128xf32, #tpu.memory_space<vmem>>, vector<8x128xf32>,
    return
  }
  func.func @transform_0(%arg0: i32) -> (i32, i32) {
    %c0_i32 = arith.constant 0 : i32
    %c0_i32_0 = arith.constant 0 : i32
    return %arg0, %c0_i32 : i32, i32
  }
  func.func @transform_1(%arg0: i32) -> (i32, i32) {
    %c0_i32 = arith.constant 0 : i32
    %c0_i32_0 = arith.constant 0 : i32
    %c0_i32_1 = arith.constant 0 : i32
    return %c0_i32, %c0_i32_0 : i32, i32
  }
  func.func @transform_2(%arg0: i32) -> (i32, i32) {
    %c0_i32 = arith.constant 0 : i32
    %c0_i32_0 = arith.constant 0 : i32
    %c0_i32_1 = arith.constant 0 : i32
    return %c0_i32, %c0_i32_0 : i32, i32
  }
  func.func @transform_3(%arg0: i32) -> (i32, i32) {
    %c0_i32 = arith.constant 0 : i32
    %c0_i32_0 = arith.constant 0 : i32
    %c0_i32_1 = arith.constant 0 : i32
    return %c0_i32, %c0_i32_0 : i32, i32
  }
  func.func @transform_4(%arg0: i32) -> (i32, i32) {
    %c0_i32 = arith.constant 0 : i32
    %c0_i32_0 = arith.constant 0 : i32
    %c0_i32_1 = arith.constant 0 : i32
    return %c0_i32, %c0_i32_0 : i32, i32
  }
  func.func @transform_5(%arg0: i32) -> (i32, i32) {
    %c0_i32 = arith.constant 0 : i32
    %c0_i32_0 = arith.constant 0 : i32
    %c0_i32_1 = arith.constant 0 : i32
    return %c0_i32, %c0_i32_0 : i32, i32
  }
  func.func @transform_6(%arg0: i32) -> (i32, i32) {
    %c0_i32 = arith.constant 0 : i32
    %c0_i32_0 = arith.constant 0 : i32
    %c0_i32_1 = arith.constant 0 : i32
    return %c0_i32, %c0_i32_0 : i32, i32
  }
  func.func @transform_7(%arg0: i32) -> (i32, i32) {
    %c0_i32 = arith.constant 0 : i32
    %c0_i32_0 = arith.constant 0 : i32
    return %arg0, %c0_i32 : i32, i32
  }
}

</mosaic_0001>

<llo_original>
// kernel: _forward.1
$region0: #{_forward.1}
  #allocation0 [shape = 'u32[]', space=smem, size = 0x4, offset = 0x4, fixed_abs, tag = 'smem constant byte address 0x4 - core index']
  #allocation1 [shape = 'u32[144,128]{1,0:T(1,128)}', space=vmem, size = 0x12000, scoped, tag = 'internal scratch']
  %s0 = inlined_call_operand.vmem [shape: f32[8,128], index: 0, kind: input, shape index: {}]
  %s1 = inlined_call_operand.hbm [shape: bf16[128,128], index: 1, kind: input, shape index: {}]
  %s2 = inlined_call_operand.hbm [shape: f32[1,128], index: 2, kind: input, shape index: {}]
  %s3 = inlined_call_operand.vmem [shape: bf16[128,128], index: 3, kind: input, shape index: {}]
  %s4 = inlined_call_operand.vmem [shape: f32[1,128], index: 4, kind: input, shape index: {}]
  %s5 = inlined_call_operand.vmem [shape: bf16[128,128], index: 5, kind: input, shape index: {}]
  %s6 = inlined_call_operand.vmem [shape: f32[1,128], index: 6, kind: input, shape index: {}]
  %s7 = inlined_call_operand.hbm [shape: f32[8,128], index: 7, kind: output, shape index: {}]
  %s8 = sld [smem:[#allocation0]]
  $region46: #{_forward.1} parent=0
    _
  %s10 = ssub.s32 1, %s8
  %s11 = scalar_select 0, %s10, %s8
  $region1: #{_forward.1} parent=0
    #allocation2 [shape = 'u8[32768]{0}', space=vmem, size = 0x8000, scoped, tag = 'input window, operand 1, single buffered']
    #allocation3 [shape = 's32[1]{0}', space=sflag, size = 0x4, scoped, tag = 'scoped memory for _forward.1']
    #allocation4 [shape = 's32[1]{0}', space=sflag, size = 0x4, scoped, tag = 'scoped memory for _forward.1']
    #allocation5 [shape = 'u8[512]{0}', space=vmem, size = 0x400, scoped, tag = 'input window, operand 2, single buffered']
    #allocation6 [shape = 's32[1]{0}', space=sflag, size = 0x4, scoped, tag = 'scoped memory for _forward.1']
    #allocation7 [shape = 'u8[4096]{0}', space=vmem, size = 0x1000, scoped, tag = 'output window, operand 0, single buffered']
    %12 = vsyncpa [#allocation3], 0
    %13 = vsyncpa [#allocation6], 0
    %14 = vsyncpa [#allocation4], 0
    // Predicated region
    $region2: #{_forward.1} parent=1 // pred_check
      _
    $region3: #{_forward.1} parent=1 // pred_check_branch
      %16 = sbr.rel (0) target = $region5
    $region4: #{_forward.1} parent=1 // pred_region
      _
    $region5: #{_forward.1} parent=1 // pred_fallthru
      _
    // Predicated region
    $region6: #{_forward.1} parent=1 // pred_check
      _
    $region7: #{_forward.1} parent=1 // pred_check_branch
      %18 = sbr.rel (0) target = $region9
    $region8: #{_forward.1} parent=1 // pred_region
      %s20 = ssub.s32 1024, 1024
      %21 = vsyncadd [#allocation3], %s20
      %s22 = sshll.u32 [#allocation2], 4
      %s23 = int_to_ptr.vmem [resolvable:$true] %s22
      %28 = dma.hbm_to_vmem [thread:$0]  %s1, 1024, %s23, [#allocation3], 64, 64, 4
    $region9: #{_forward.1} parent=1 // pred_fallthru
      _
    // Predicated region
    $region10: #{_forward.1} parent=1 // pred_check
      _
    $region11: #{_forward.1} parent=1 // pred_check_branch
      %30 = sbr.rel (0) target = $region13
    $region12: #{_forward.1} parent=1 // pred_region
      %s32 = ssub.s32 16, 16
      %33 = vsyncadd [#allocation6], %s32
      %s35 = sshll.u32 [#allocation5], 4
      %s36 = int_to_ptr.vmem [resolvable:$true] %s35
      %38 = dma.hbm_to_vmem [thread:$0]  %s2, 16, %s36, [#allocation6]
    $region13: #{_forward.1} parent=1 // pred_fallthru
      _
    // Predicated region
    $region14: #{_forward.1} parent=1 // pred_check
      _
    $region15: #{_forward.1} parent=1 // pred_check_branch
      %40 = sbr.rel (0) target = $region17
    $region16: #{_forward.1} parent=1 // pred_region
      _
    $region17: #{_forward.1} parent=1 // pred_fallthru
      _
    // Predicated region
    $region18: #{_forward.1} parent=1 // pred_check
      _
    $region19: #{_forward.1} parent=1 // pred_check_branch
      %42 = sbr.rel (0) target = $region21
    $region20: #{_forward.1} parent=1 // pred_region
      _
    $region21: #{_forward.1} parent=1 // pred_fallthru
      _
    // Predicated region
    $region22: #{_forward.1} parent=1 // pred_check
      _
    $region23: #{_forward.1} parent=1 // pred_check_branch
      %44 = sbr.rel (0) target = $region25
    $region24: #{_forward.1} parent=1 // pred_region
      _
    $region25: #{_forward.1} parent=1 // pred_fallthru
      _
    // Predicated region
    $region26: #{_forward.1} parent=1 // pred_check
      _
    $region27: #{_forward.1} parent=1 // pred_check_branch
      %46 = sbr.rel (0) target = $region29
    $region28: #{_forward.1} parent=1 // pred_region
      _
    $region29: #{_forward.1} parent=1 // pred_fallthru
      _
    // Predicated region
    $region30: #{_forward.1} parent=1 // pred_check
      _
    $region31: #{_forward.1} parent=1 // pred_check_branch
      %48 = sbr.rel (0) target = $region33
    $region32: #{_forward.1} parent=1 // pred_region
      %49 = dma.done [#allocation3], 1024
    $region33: #{_forward.1} parent=1 // pred_fallthru
      _
    // Predicated region
    $region34: #{_forward.1} parent=1 // pred_check
      _
    $region35: #{_forward.1} parent=1 // pred_check_branch
      %51 = sbr.rel (0) target = $region37
    $region36: #{_forward.1} parent=1 // pred_region
      %52 = dma.done [#allocation6], 16
    $region37: #{_forward.1} parent=1 // pred_fallthru
      _
    %v54 = vld [vmem:[%s0] sm:$0xff]
    %v55 = vpack.c.bf16 %v54, %v54
    %v56 = vld [vmem:[#allocation2] sm:$0xf]
    %v57 = vld [vmem:[#allocation2 + $0x4] sm:$0xf]
    %v58 = vld [vmem:[#allocation2 + $0x8] sm:$0xf]
    %v59 = vld [vmem:[#allocation2 + $0xc] sm:$0xf]
    %v60 = vld [vmem:[#allocation2 + $0x10] sm:$0xf]
    %v61 = vld [vmem:[#allocation2 + $0x14] sm:$0xf]
    %v62 = vld [vmem:[#allocation2 + $0x18] sm:$0xf]
    %v63 = vld [vmem:[#allocation2 + $0x1c] sm:$0xf]
    %v64 = vld [vmem:[#allocation2 + $0x20] sm:$0xf]
    %v65 = vld [vmem:[#allocation2 + $0x24] sm:$0xf]
    %v66 = vld [vmem:[#allocation2 + $0x28] sm:$0xf]
    %v67 = vld [vmem:[#allocation2 + $0x2c] sm:$0xf]
    %v68 = vld [vmem:[#allocation2 + $0x30] sm:$0xf]
    %v69 = vld [vmem:[#allocation2 + $0x34] sm:$0xf]
    %v70 = vld [vmem:[#allocation2 + $0x38] sm:$0xf]
    %v71 = vld [vmem:[#allocation2 + $0x3c] sm:$0xf]
    %v72 = vld [vmem:[#allocation5] sm:$0x1]
    %v74 = vlaneseq
    %v75 = vshrl.u32 %v74, 7
    %v76 = vsub.s32 0, %v75
    %v77 = vrot.slane %v72, %v76
    %v95 = vunpack.c.l.b16 %v56
    %v96 = vunpack.c.l.b16 %v57
    %v97 = vunpack.c.l.b16 %v58
    %v98 = vunpack.c.l.b16 %v59
    %v99 = vunpack.c.l.b16 %v60
    %v100 = vunpack.c.l.b16 %v61
    %v101 = vunpack.c.l.b16 %v62
    %v102 = vunpack.c.l.b16 %v63
    %v103 = vunpack.c.l.b16 %v64
    %v104 = vunpack.c.l.b16 %v65
    %v105 = vunpack.c.l.b16 %v66
    %v106 = vunpack.c.l.b16 %v67
    %v107 = vunpack.c.l.b16 %v68
    %v108 = vunpack.c.l.b16 %v69
    %v109 = vunpack.c.l.b16 %v70
    %v110 = vunpack.c.l.b16 %v71
    %v111 = vpack.c.b16 %v96, %v95
    %v112 = vpack.c.b16 %v98, %v97
    %v113 = vpack.c.b16 %v100, %v99
    %v114 = vpack.c.b16 %v102, %v101
    %v115 = vpack.c.b16 %v104, %v103
    %v116 = vpack.c.b16 %v106, %v105
    %v117 = vpack.c.b16 %v108, %v107
    %v118 = vpack.c.b16 %v110, %v109
    %127 = vmatprep.subr.bf16.mxu0 0
    %128 = vmatpush1.bf16.msra.mxu0 %v118
    %129 = vmatprep.subr.bf16.mxu0 0
    %130 = vmatpush1.bf16.msra.mxu0 %v117
    %131 = vmatprep.subr.bf16.mxu0 0
    %132 = vmatpush1.bf16.msra.mxu0 %v116
    %133 = vmatprep.subr.bf16.mxu0 0
    %134 = vmatpush1.bf16.msra.mxu0 %v115
    %135 = vmatprep.subr.bf16.mxu0 0
    %136 = vmatpush1.bf16.msra.mxu0 %v114
    %137 = vmatprep.subr.bf16.mxu0 0
    %138 = vmatpush1.bf16.msra.mxu0 %v113
    %139 = vmatprep.subr.bf16.mxu0 0
    %140 = vmatpush1.bf16.msra.mxu0 %v112
    %141 = vmatprep.subr.bf16.mxu0 0
    %142 = vmatpush1.bf16.msra.mxu0 %v111
    %143 = vmatprep.subr.bf16.mxu0 0
    %144 = vmatpush2.bf16.msra.mxu0 0
    %145 = vmatprep.subr.bf16.mxu0 0
    %146 = vmatpush2.bf16.msra.mxu0 0
    %147 = vmatprep.subr.bf16.mxu0 0
    %148 = vmatpush2.bf16.msra.mxu0 0
    %149 = vmatprep.subr.bf16.mxu0 0
    %150 = vmatpush2.bf16.msra.mxu0 0
    %151 = vmatprep.subr.bf16.mxu0 0
    %152 = vmatpush2.bf16.msra.mxu0 0
    %153 = vmatprep.subr.bf16.mxu0 0
    %154 = vmatpush2.bf16.msra.mxu0 0
    %155 = vmatprep.subr.bf16.mxu0 0
    %156 = vmatpush2.bf16.msra.mxu0 0
    %157 = vmatprep.subr.bf16.mxu0 0
    %158 = vmatpush2.bf16.msra.mxu0 0
    %159 = vmatprep.mubr.bf16.mxu0 0
    %160 = vmatmul.mubr.bf16.gmra.mxu0 %v55
    %v161 = vpop.f32.mrf.mxu0
    %v162 = vadd.f32 %v77, %v161
    %v163 = vpop.f32.mrf.mxu0
    %v164 = vpop.f32.mrf.mxu0
    %v165 = vpop.f32.mrf.mxu0
    %166 = vdwg.mxu0
    %v167 = vmax.f32 %v162, 0.0
    %v168 = vpack.c.bf16 %v167, %v167
    %v169 = vld [vmem:[%s3] sm:$0xf]
    %v170 = vld [vmem:[%s3 + $0x4] sm:$0xf]
    %v171 = vld [vmem:[%s3 + $0x8] sm:$0xf]
    %v172 = vld [vmem:[%s3 + $0xc] sm:$0xf]
    %v173 = vld [vmem:[%s3 + $0x10] sm:$0xf]
    %v174 = vld [vmem:[%s3 + $0x14] sm:$0xf]
    %v175 = vld [vmem:[%s3 + $0x18] sm:$0xf]
    %v176 = vld [vmem:[%s3 + $0x1c] sm:$0xf]
    %v177 = vld [vmem:[%s3 + $0x20] sm:$0xf]
    %v178 = vld [vmem:[%s3 + $0x24] sm:$0xf]
    %v179 = vld [vmem:[%s3 + $0x28] sm:$0xf]
    %v180 = vld [vmem:[%s3 + $0x2c] sm:$0xf]
    %v181 = vld [vmem:[%s3 + $0x30] sm:$0xf]
    %v182 = vld [vmem:[%s3 + $0x34] sm:$0xf]
    %v183 = vld [vmem:[%s3 + $0x38] sm:$0xf]
    %v184 = vld [vmem:[%s3 + $0x3c] sm:$0xf]
    %v185 = vld [vmem:[%s4] sm:$0x1]
    %v187 = vlaneseq
    %v188 = vshrl.u32 %v187, 7
    %v189 = vsub.s32 0, %v188
    %v190 = vrot.slane %v185, %v189
    %v208 = vunpack.c.l.b16 %v169
    %v209 = vunpack.c.l.b16 %v170
    %v210 = vunpack.c.l.b16 %v171
    %v211 = vunpack.c.l.b16 %v172
    %v212 = vunpack.c.l.b16 %v173
    %v213 = vunpack.c.l.b16 %v174
    %v214 = vunpack.c.l.b16 %v175
    %v215 = vunpack.c.l.b16 %v176
    %v216 = vunpack.c.l.b16 %v177
    %v217 = vunpack.c.l.b16 %v178
    %v218 = vunpack.c.l.b16 %v179
    %v219 = vunpack.c.l.b16 %v180
    %v220 = vunpack.c.l.b16 %v181
    %v221 = vunpack.c.l.b16 %v182
    %v222 = vunpack.c.l.b16 %v183
    %v223 = vunpack.c.l.b16 %v184
    %v224 = vpack.c.b16 %v209, %v208
    %v225 = vpack.c.b16 %v211, %v210
    %v226 = vpack.c.b16 %v213, %v212
    %v227 = vpack.c.b16 %v215, %v214
    %v228 = vpack.c.b16 %v217, %v216
    %v229 = vpack.c.b16 %v219, %v218
    %v230 = vpack.c.b16 %v221, %v220
    %v231 = vpack.c.b16 %v223, %v222
    %240 = vmatprep.subr.bf16.mxu0 0
    %241 = vmatpush1.bf16.msra.mxu0 %v231
    %242 = vmatprep.subr.bf16.mxu0 0
    %243 = vmatpush1.bf16.msra.mxu0 %v230
    %244 = vmatprep.subr.bf16.mxu0 0
    %245 = vmatpush1.bf16.msra.mxu0 %v229
    %246 = vmatprep.subr.bf16.mxu0 0
    %247 = vmatpush1.bf16.msra.mxu0 %v228
    %248 = vmatprep.subr.bf16.mxu0 0
    %249 = vmatpush1.bf16.msra.mxu0 %v227
    %250 = vmatprep.subr.bf16.mxu0 0
    %251 = vmatpush1.bf16.msra.mxu0 %v226
    %252 = vmatprep.subr.bf16.mxu0 0
    %253 = vmatpush1.bf16.msra.mxu0 %v225
    %254 = vmatprep.subr.bf16.mxu0 0
    %255 = vmatpush1.bf16.msra.mxu0 %v224
    %256 = vmatprep.subr.bf16.mxu0 0
    %257 = vmatpush2.bf16.msra.mxu0 0
    %258 = vmatprep.subr.bf16.mxu0 0
    %259 = vmatpush2.bf16.msra.mxu0 0
    %260 = vmatprep.subr.bf16.mxu0 0
    %261 = vmatpush2.bf16.msra.mxu0 0
    %262 = vmatprep.subr.bf16.mxu0 0
    %263 = vmatpush2.bf16.msra.mxu0 0
    %264 = vmatprep.subr.bf16.mxu0 0
    %265 = vmatpush2.bf16.msra.mxu0 0
    %266 = vmatprep.subr.bf16.mxu0 0
    %267 = vmatpush2.bf16.msra.mxu0 0
    %268 = vmatprep.subr.bf16.mxu0 0
    %269 = vmatpush2.bf16.msra.mxu0 0
    %270 = vmatprep.subr.bf16.mxu0 0
    %271 = vmatpush2.bf16.msra.mxu0 0
    %272 = vmatprep.mubr.bf16.mxu0 0
    %273 = vmatmul.mubr.bf16.gmra.mxu0 %v168
    %v274 = vpop.f32.mrf.mxu0
    %v275 = vadd.f32 %v190, %v274
    %v276 = vpop.f32.mrf.mxu0
    %v277 = vpop.f32.mrf.mxu0
    %v278 = vpop.f32.mrf.mxu0
    %279 = vdwg.mxu0
    %v280 = vmax.f32 %v275, 0.0
    %v281 = vpack.c.bf16 %v280, %v280
    %v282 = vld [vmem:[%s5] sm:$0xf]
    %v283 = vld [vmem:[%s5 + $0x4] sm:$0xf]
    %v284 = vld [vmem:[%s5 + $0x8] sm:$0xf]
    %v285 = vld [vmem:[%s5 + $0xc] sm:$0xf]
    %v286 = vld [vmem:[%s5 + $0x10] sm:$0xf]
    %v287 = vld [vmem:[%s5 + $0x14] sm:$0xf]
    %v288 = vld [vmem:[%s5 + $0x18] sm:$0xf]
    %v289 = vld [vmem:[%s5 + $0x1c] sm:$0xf]
    %v290 = vld [vmem:[%s5 + $0x20] sm:$0xf]
    %v291 = vld [vmem:[%s5 + $0x24] sm:$0xf]
    %v292 = vld [vmem:[%s5 + $0x28] sm:$0xf]
    %v293 = vld [vmem:[%s5 + $0x2c] sm:$0xf]
    %v294 = vld [vmem:[%s5 + $0x30] sm:$0xf]
    %v295 = vld [vmem:[%s5 + $0x34] sm:$0xf]
    %v296 = vld [vmem:[%s5 + $0x38] sm:$0xf]
    %v297 = vld [vmem:[%s5 + $0x3c] sm:$0xf]
    %v298 = vld [vmem:[%s6] sm:$0x1]
    %v300 = vlaneseq
    %v301 = vshrl.u32 %v300, 7
    %v302 = vsub.s32 0, %v301
    %v303 = vrot.slane %v298, %v302
    %v321 = vunpack.c.l.b16 %v282
    %v322 = vunpack.c.l.b16 %v283
    %v323 = vunpack.c.l.b16 %v284
    %v324 = vunpack.c.l.b16 %v285
    %v325 = vunpack.c.l.b16 %v286
    %v326 = vunpack.c.l.b16 %v287
    %v327 = vunpack.c.l.b16 %v288
    %v328 = vunpack.c.l.b16 %v289
    %v329 = vunpack.c.l.b16 %v290
    %v330 = vunpack.c.l.b16 %v291
    %v331 = vunpack.c.l.b16 %v292
    %v332 = vunpack.c.l.b16 %v293
    %v333 = vunpack.c.l.b16 %v294
    %v334 = vunpack.c.l.b16 %v295
    %v335 = vunpack.c.l.b16 %v296
    %v336 = vunpack.c.l.b16 %v297
    %v337 = vpack.c.b16 %v322, %v321
    %v338 = vpack.c.b16 %v324, %v323
    %v339 = vpack.c.b16 %v326, %v325
    %v340 = vpack.c.b16 %v328, %v327
    %v341 = vpack.c.b16 %v330, %v329
    %v342 = vpack.c.b16 %v332, %v331
    %v343 = vpack.c.b16 %v334, %v333
    %v344 = vpack.c.b16 %v336, %v335
    %353 = vmatprep.subr.bf16.mxu0 0
    %354 = vmatpush1.bf16.msra.mxu0 %v344
    %355 = vmatprep.subr.bf16.mxu0 0
    %356 = vmatpush1.bf16.msra.mxu0 %v343
    %357 = vmatprep.subr.bf16.mxu0 0
    %358 = vmatpush1.bf16.msra.mxu0 %v342
    %359 = vmatprep.subr.bf16.mxu0 0
    %360 = vmatpush1.bf16.msra.mxu0 %v341
    %361 = vmatprep.subr.bf16.mxu0 0
    %362 = vmatpush1.bf16.msra.mxu0 %v340
    %363 = vmatprep.subr.bf16.mxu0 0
    %364 = vmatpush1.bf16.msra.mxu0 %v339
    %365 = vmatprep.subr.bf16.mxu0 0
    %366 = vmatpush1.bf16.msra.mxu0 %v338
    %367 = vmatprep.subr.bf16.mxu0 0
    %368 = vmatpush1.bf16.msra.mxu0 %v337
    %369 = vmatprep.subr.bf16.mxu0 0
    %370 = vmatpush2.bf16.msra.mxu0 0
    %371 = vmatprep.subr.bf16.mxu0 0
    %372 = vmatpush2.bf16.msra.mxu0 0
    %373 = vmatprep.subr.bf16.mxu0 0
    %374 = vmatpush2.bf16.msra.mxu0 0
    %375 = vmatprep.subr.bf16.mxu0 0
    %376 = vmatpush2.bf16.msra.mxu0 0
    %377 = vmatprep.subr.bf16.mxu0 0
    %378 = vmatpush2.bf16.msra.mxu0 0
    %379 = vmatprep.subr.bf16.mxu0 0
    %380 = vmatpush2.bf16.msra.mxu0 0
    %381 = vmatprep.subr.bf16.mxu0 0
    %382 = vmatpush2.bf16.msra.mxu0 0
    %383 = vmatprep.subr.bf16.mxu0 0
    %384 = vmatpush2.bf16.msra.mxu0 0
    %385 = vmatprep.mubr.bf16.mxu0 0
    %386 = vmatmul.mubr.bf16.gmra.mxu0 %v281
    %v387 = vpop.f32.mrf.mxu0
    %v388 = vadd.f32 %v303, %v387
    %v389 = vpop.f32.mrf.mxu0
    %v390 = vpop.f32.mrf.mxu0
    %v391 = vpop.f32.mrf.mxu0
    %392 = vdwg.mxu0
    %v393 = vsub.f32 0.0, %v388
    %v394 = vmul.f32 %v393, 1.442695
    %v395 = vpow.pop %v394
    %v396 = vadd.f32 %v395, 1.0
    %v397 = vrcp.pop %v396
    %398 = vst [vmem:[#allocation7] sm:$0xff] %v397
    // Predicated region
    $region38: #{_forward.1} parent=1 // pred_check
      _
    $region39: #{_forward.1} parent=1 // pred_check_branch
      %400 = sbr.rel (0) target = $region41
    $region40: #{_forward.1} parent=1 // pred_region
      %s402 = ssub.s32 128, 128
      %403 = vsyncadd [#allocation4], %s402
      %s405 = sshll.u32 [#allocation7], 4
      %s406 = int_to_ptr.vmem [resolvable:$true] %s405
      %408 = dma.vmem_to_hbm [thread:$0]  %s406, 128, %s7, [#allocation4]
    $region41: #{_forward.1} parent=1 // pred_fallthru
      _
    // Predicated region
    $region42: #{_forward.1} parent=1 // pred_check
      _
    $region43: #{_forward.1} parent=1 // pred_check_branch
      %410 = sbr.rel (0) target = $region45
    $region44: #{_forward.1} parent=1 // pred_region
      %411 = dma.done [#allocation4], 128
    $region45: #{_forward.1} parent=1 // pred_fallthru
      _
    %412 = vsyncpa [#allocation3], 1
    %413 = vsyncpa [#allocation6], 1
    %414 = vsyncpa [#allocation4], 1

</llo_original>
